<compile_context>
chip_gen: v6e
topology: v6e:2x2x1
jax: 0.10.0
libtpu: 0.0.40
codegen_flags: <defaults>
</compile_context>

<pallas_src>
import math

import numpy as np
import jax
import jax.numpy as jnp
from jax import lax
from jax.experimental import pallas as pl
from jax.experimental.pallas import tpu as pltpu

EPS = 1e-5
_HIGH = lax.Precision.HIGHEST


# --------------------------------------------------------------------------- #
# small helpers
# --------------------------------------------------------------------------- #
def _hi_lo_bf16(a_f32):
    hi = a_f32.astype(jnp.bfloat16)
    lo = (a_f32 - hi.astype(jnp.float32)).astype(jnp.bfloat16)
    return hi, lo


def _sel_dot_left(sel_bf16, act_f32):
    """sel @ act where sel is an exact-in-bf16 0/1 selector; 2 single-pass matmuls."""
    hi, lo = _hi_lo_bf16(act_f32)
    return (jnp.dot(sel_bf16, hi, preferred_element_type=jnp.float32)
            + jnp.dot(sel_bf16, lo, preferred_element_type=jnp.float32))


def _sel_dot_right(act_f32, sel_bf16):
    """act @ sel where sel is an exact-in-bf16 0/1 selector; 2 single-pass matmuls."""
    hi, lo = _hi_lo_bf16(act_f32)
    return (jnp.dot(hi, sel_bf16, preferred_element_type=jnp.float32)
            + jnp.dot(lo, sel_bf16, preferred_element_type=jnp.float32))


def block_dims(N, H0, W0, C):
    """Static per-block geometry (physical row counts padded up to >=8 sublanes)."""
    dims = []
    H, W = H0, W0
    rows_in_store = N * H0
    for _ in range(4):
        rows_active = N * H
        rows_out_active = N * (H // 2)
        rows_out_store = max(8, -(-rows_out_active // 8) * 8)
        dims.append(dict(H=H, W=W, rows_in_store=rows_in_store,
                         rows_active=rows_active,
                         rows_out_active=rows_out_active,
                         rows_out_store=rows_out_store,
                         count=N * H * W))
        rows_in_store = rows_out_store
        H, W = H // 2, W // 2
    return dims


def detect_roll_sign():
    """Probe pltpu.roll's shift convention once (tiny kernel, run at init)."""
    def probe(x_ref, o_ref):
        o_ref[...] = pltpu.roll(x_ref[...], 1, axis=0)

    x = jnp.broadcast_to(jnp.arange(8, dtype=jnp.float32)[:, None], (8, 128))
    out = pl.pallas_call(
        probe,
        out_shape=jax.ShapeDtypeStruct((8, 128), jnp.float32),
        in_specs=[pl.BlockSpec(memory_space=pltpu.MemorySpace.VMEM)],
        out_specs=pl.BlockSpec(memory_space=pltpu.MemorySpace.VMEM),
    )(x)
    out = np.asarray(jax.block_until_ready(out))
    if np.array_equal(out, np.asarray(jnp.roll(x, 1, axis=0))):
        return 1      # pltpu.roll(x, s)[i] == x[i - s]  (jnp.roll convention)
    if np.array_equal(out, np.asarray(jnp.roll(x, -1, axis=0))):
        return -1     # pltpu.roll(x, s)[i] == x[i + s]
    raise RuntimeError("unexpected pltpu.roll semantics")


# --------------------------------------------------------------------------- #
# fused kernel
# --------------------------------------------------------------------------- #
def make_kernel(dims, C, L, roll_sign):
    n_reduce = int(math.log2(L // C))   # doubling lane-roll steps cover every lane group

    def kernel(x_ref, b_ref, q_ref, p_ref, v_ref, o1_ref, o2_ref, o3_ref, o4_ref):
        out_refs = (o1_ref, o2_ref, o3_ref, o4_ref)
        x = x_ref[...]                                            # (rows, L) canvas
        for blk, d in enumerate(dims):                            # statically unrolled
            rows, H = d["rows_in_store"], d["H"]
            ro_store = d["rows_out_store"]

            # ---- 3x3 conv (padding=1) --------------------------------------
            # vertical taps: sublane roll + image-boundary mask (off the MXU)
            h_idx = lax.broadcasted_iota(jnp.int32, (rows, 1), 0) % H
            x_dn = jnp.where(h_idx != 0,
                             pltpu.roll(x, (roll_sign) % rows, axis=0), 0.0)   # x[r-1]
            x_up = jnp.where(h_idx != (H - 1),
                             pltpu.roll(x, (-roll_sign) % rows, axis=0), 0.0)  # x[r+1]
            # horizontal taps + channel mix: one stacked MXU matmul per block
            xcat = jnp.concatenate([x_dn, x, x_up], axis=1)       # (rows, 3L)
            acc = jnp.dot(xcat, b_ref[blk], precision=_HIGH,
                          preferred_element_type=jnp.float32)     # (rows, L)
            # conv bias omitted: a per-channel constant cancels exactly in the
            # training-mode BatchNorm below.

            # ---- BatchNorm2d (training mode, biased batch stats) ------------
            rs = jnp.sum(acc, axis=0, keepdims=True)              # (1, L)
            rsq = jnp.sum(acc * acc, axis=0, keepdims=True)       # (1, L)
            for i in range(n_reduce):                             # lane-roll tree reduce
                s = C << i
                rs = rs + pltpu.roll(rs, s, axis=1)
                rsq = rsq + pltpu.roll(rsq, s, axis=1)
            inv_cnt = 1.0 / float(d["count"])
            mean = rs * inv_cnt
            var = jnp.maximum(rsq * inv_cnt - mean * mean, 0.0)
            y = ((acc - mean) * lax.rsqrt(var + EPS)
                 * v_ref[blk, 0:1, :] + v_ref[blk, 1:2, :])       # gamma / beta
            y = jnp.maximum(y, 0.0)                               # ReLU

            # ---- MaxPool2d(2) ------------------------------------------------
            # pool over h: pairwise max via sublane roll, then one even-row
            # compaction selector matmul (also zeroes the padded output rows)
            y_pair = jnp.maximum(y, pltpu.roll(y, (-roll_sign) % rows, axis=0))
            p_sel = p_ref[blk, :ro_store, :rows].astype(jnp.bfloat16)
            yh = _sel_dot_left(p_sel, y_pair)                     # (ro_store, L)
            # pool over w: one 2L-wide selector matmul + lane-half max
            z = _sel_dot_right(yh, q_ref[blk])                    # (ro_store, 2L)
            x = jnp.maximum(z[:, :L], z[:, L:])

            out_refs[blk][...] = x                                # dense 128-lane store

    return kernel


# --------------------------------------------------------------------------- #
# host-side constant packing
# --------------------------------------------------------------------------- #
def build_block_constants(params, dims, N, H0, W0, C):
    L = W0 * C
    max_ro = max(d["rows_out_store"] for d in dims)
    max_ri = max(d["rows_in_store"] for d in dims)
    Bs = np.zeros((4, 3 * L, L), np.float32)      # stacked banded conv weights (dh-major)
    Qc = np.zeros((4, L, 2 * L), np.float32)      # pool-w selectors, even | odd halves
    Pe = np.zeros((4, max_ro, max_ri), np.float32)  # pool-h even-row compaction
    V = np.zeros((4, 2, L), np.float32)           # tiled BN gamma / beta (0 in lane padding)
    eyeC = np.eye(C, dtype=np.float32)

    for k, (prm, d) in enumerate(zip(params, dims)):
        H, W = d["H"], d["W"]
        wc = W * C
        K = np.asarray(prm["w"], np.float32)      # (kh, kw, ci, co)
        gamma = np.asarray(prm["gamma"], np.float32)
        beta = np.asarray(prm["beta"], np.float32)

        for dh in range(3):                       # banded (w,ci)->(w',co), horizontal padding
            for w in range(W):
                for wp in range(W):
                    dw = w - wp + 1
                    if 0 <= dw <= 2:
                        Bs[k, dh * L + w * C:dh * L + (w + 1) * C,
                           wp * C:(wp + 1) * C] = K[dh, dw]

        for m in range(W // 2):                   # pool-w: even half | odd half
            Qc[k, (2 * m) * C:(2 * m + 1) * C, m * C:(m + 1) * C] = eyeC
            Qc[k, (2 * m + 1) * C:(2 * m + 2) * C, L + m * C:L + (m + 1) * C] = eyeC

        for j in range(d["rows_out_active"]):     # pool-h even-row compaction
            Pe[k, j, 2 * j] = 1.0

        V[k, 0, :wc] = np.tile(gamma, W)
        V[k, 1, :wc] = np.tile(beta, W)

    return (jnp.asarray(Bs),                            # f32: real conv weights (HIGHEST)
            jnp.asarray(Qc, dtype=jnp.bfloat16),        # 0/1, exact in bf16 (halves DMA)
            jnp.asarray(Pe),                            # tiny, cast to bf16 in kernel
            jnp.asarray(V))


# --------------------------------------------------------------------------- #
# wrapper
# --------------------------------------------------------------------------- #
def feature_prototypical_forward(x_nchw, consts, dims, roll_sign):
    """Returns (conv1_out, conv2_out, conv3_out, conv4_out, flattened), NCHW like torch."""
    N, C, H0, W0 = x_nchw.shape
    R, L = N * H0, W0 * C
    # NCHW -> lane-dense (N*H, W*C) canvas (rows = (n,h), lanes = (w,c)).
    x2 = jnp.transpose(x_nchw, (0, 2, 3, 1)).reshape(R, L)

    kernel = make_kernel(dims, C, L, roll_sign)
    canvases = pl.pallas_call(
        kernel,
        out_shape=tuple(jax.ShapeDtypeStruct((d["rows_out_store"], L), jnp.float32)
                        for d in dims),
        in_specs=[pl.BlockSpec(memory_space=pltpu.MemorySpace.VMEM)] * 5,
        out_specs=tuple(pl.BlockSpec(memory_space=pltpu.MemorySpace.VMEM)
                        for _ in range(4)),
    )(x2, *consts)

    outs = []
    for k, d in enumerate(dims):
        Ho, Wo = d["H"] // 2, d["W"] // 2
        o = canvases[k][:N * Ho, :Wo * C].reshape(N, Ho, Wo, C)
        outs.append(jnp.transpose(o, (0, 3, 1, 2)))     # back to NCHW
    flat = outs[-1].reshape(N, -1)
    return tuple(outs) + (flat,)


# ------------------------- pure-JAX reference (for checking) ----------------- #
def _ref_block(x_nchw, w, b, gamma, beta):
    w_oihw = jnp.transpose(w, (3, 2, 0, 1))              # (Cout, Cin, 3, 3)
    y = lax.conv_general_dilated(x_nchw, w_oihw, (1, 1), "SAME",
                                 dimension_numbers=("NCHW", "OIHW", "NCHW"),
                                 precision=_HIGH)
    y = y + b[None, :, None, None]
    mean = jnp.mean(y, axis=(0, 2, 3), keepdims=True)
    var = jnp.mean((y - mean) ** 2, axis=(0, 2, 3), keepdims=True)
    y = (y - mean) * lax.rsqrt(var + EPS)
    y = y * gamma[None, :, None, None] + beta[None, :, None, None]
    y = jnp.maximum(y, 0.0)
    n, c, h, wd = y.shape
    return y.reshape(n, c, h // 2, 2, wd // 2, 2).max(axis=(3, 5))


def reference_forward(x_nchw, params):
    outs = []
    x = x_nchw
    for p in params:
        x = _ref_block(x, p["w"], p["b"], p["gamma"], p["beta"])
        outs.append(x)
    flat = outs[-1].reshape(outs[-1].shape[0], -1)
    return tuple(outs) + (flat,)


if __name__ == "__main__":
    # The torch module only type-checks when input_channel_num == hidden_channel_num
    # (every block maps input_channel_num -> hidden_channel_num), so C=8 everywhere.
    N, C, Hs, Ws = 2, 8, 16, 16
    assert (Hs & (Hs - 1)) == 0 and (Ws & (Ws - 1)) == 0 and Hs >= 16 and Ws >= 16

    key = jax.random.PRNGKey(0)
    key, kx = jax.random.split(key)
    x = jax.random.normal(kx, (N, C, Hs, Ws), jnp.float32)

    params = []
    for _ in range(4):
        key, kw, kb = jax.random.split(key, 3)
        bound = 1.0 / math.sqrt(C * 3 * 3)               # torch Conv2d default init bound
        params.append(dict(
            w=jax.random.uniform(kw, (3, 3, C, C), jnp.float32, -bound, bound),
            b=jax.random.uniform(kb, (C,), jnp.float32, -bound, bound),
            gamma=jnp.ones((C,), jnp.float32),           # nn.BatchNorm2d default init
            beta=jnp.zeros((C,), jnp.float32),
        ))

    dims = block_dims(N, Hs, Ws, C)
    consts = build_block_constants(params, dims, N, Hs, Ws, C)
    roll_sign = detect_roll_sign()

    fwd = jax.jit(lambda xx: feature_prototypical_forward(xx, consts, dims, roll_sign))
    outs = jax.block_until_ready(fwd(x))

    refs = reference_forward(x, params)
    for o, r in zip(outs, refs):
        assert o.shape == r.shape, (o.shape, r.shape)
        # conv matmul at HIGHEST + 2-pass bf16 selectors keep the kernel within
        # ~1e-5 of the reference; 5e-4 leaves headroom while catching real bugs.
        assert jnp.allclose(o, r, atol=5e-4, rtol=5e-4), float(jnp.max(jnp.abs(o - r)))

    print("KERNEL_OK")
</pallas_src>

<mosaic_0001>
module attributes {stable_mosaic.version = 11 : i64} {
  func.func @probe(%arg0: memref<8x128xf32, #tpu.memory_space<vmem>>, %arg1: memref<8x128xf32, #tpu.memory_space<vmem>>) attributes {dimension_semantics = [], scalar_prefetch = 0 : i64, scratch_operands = 0 : i64, tpu.core_type = #tpu.core_type<tc>} {
    %c0 = arith.constant 0 : index
    %c0_0 = arith.constant 0 : index
    %0 = vector.load %arg0[%c0, %c0_0] : memref<8x128xf32, #tpu.memory_space<vmem>>, vector<8x128xf32>
    %c1_i32 = arith.constant 1 : i32
    %1 = tpu.dynamic_rotate %0 by %c1_i32 dim 0 : vector<8x128xf32>, i32 -> vector<8x128xf32>
    %c0_1 = arith.constant 0 : index
    %c0_2 = arith.constant 0 : index
    %2 = vector.load %arg1[%c0_1, %c0_2] : memref<8x128xf32, #tpu.memory_space<vmem>>, vector<8x128xf32>
    tpu.vector_store %arg1[%c0_1, %c0_2], %1 {strides = array<i32>} : memref<8x128xf32, #tpu.memory_space<vmem>>, vector<8x128xf32>,
    return
  }
}

</mosaic_0001>

<llo_original>
// kernel: tpu_custom_call.1
$region0: #{tpu_custom_call.1}
  #allocation0 [shape = 'u32[]', space=smem, size = 0x4, offset = 0x4, fixed_abs, tag = 'smem constant byte address 0x4 - core index']
  #allocation1 [shape = 'u32[144,128]{1,0:T(1,128)}', space=vmem, size = 0x12000, scoped, tag = 'internal scratch']
  %s0 = inlined_call_operand.hbm [shape: f32[8,128], index: 0, kind: input, shape index: {}]
  %s1 = inlined_call_operand.hbm [shape: f32[8,128], index: 1, kind: output, shape index: {}]
  %s2 = sld [smem:[#allocation0]]
  $region18: #{tpu_custom_call.1} parent=0
    _
  %s4 = ssub.s32 1, %s2
  %s5 = scalar_select 0, %s4, %s2
  $region1: #{tpu_custom_call.1} parent=0
    #allocation2 [shape = 'u8[4096]{0}', space=vmem, size = 0x1000, scoped, tag = 'input window, operand 0, single buffered']
    #allocation3 [shape = 's32[1]{0}', space=sflag, size = 0x4, scoped, tag = 'scoped memory for tpu_custom_call.1']
    #allocation4 [shape = 's32[1]{0}', space=sflag, size = 0x4, scoped, tag = 'scoped memory for tpu_custom_call.1']
    #allocation5 [shape = 'u8[4096]{0}', space=vmem, size = 0x1000, scoped, tag = 'output window, operand 0, single buffered']
    %6 = vsyncpa [#allocation3], 0
    %7 = vsyncpa [#allocation4], 0
    // Predicated region
    $region2: #{tpu_custom_call.1} parent=1 // pred_check
      _
    $region3: #{tpu_custom_call.1} parent=1 // pred_check_branch
      %9 = sbr.rel (0) target = $region5
    $region4: #{tpu_custom_call.1} parent=1 // pred_region
      %s11 = ssub.s32 128, 128
      %12 = vsyncadd [#allocation3], %s11
      %s14 = sshll.u32 [#allocation2], 4
      %s15 = int_to_ptr.vmem [resolvable:$true] %s14
      %17 = dma.hbm_to_vmem [thread:$0]  %s0, 128, %s15, [#allocation3]
    $region5: #{tpu_custom_call.1} parent=1 // pred_fallthru
      _
    // Predicated region
    $region6: #{tpu_custom_call.1} parent=1 // pred_check
      _
    $region7: #{tpu_custom_call.1} parent=1 // pred_check_branch
      %19 = sbr.rel (0) target = $region9
    $region8: #{tpu_custom_call.1} parent=1 // pred_region
      %20 = dma.done [#allocation3], 128
    $region9: #{tpu_custom_call.1} parent=1 // pred_fallthru
      _
    %v21 = vld [vmem:[#allocation2] sm:$0xff]
    %v22 = vrot.slane %v21, 7
    %23 = vst [vmem:[#allocation5] sm:$0xff] %v22
    // Predicated region
    $region10: #{tpu_custom_call.1} parent=1 // pred_check
      _
    $region11: #{tpu_custom_call.1} parent=1 // pred_check_branch
      %25 = sbr.rel (0) target = $region13
    $region12: #{tpu_custom_call.1} parent=1 // pred_region
      %s27 = ssub.s32 128, 128
      %28 = vsyncadd [#allocation4], %s27
      %s30 = sshll.u32 [#allocation5], 4
      %s31 = int_to_ptr.vmem [resolvable:$true] %s30
      %33 = dma.vmem_to_hbm [thread:$0]  %s31, 128, %s1, [#allocation4]
    $region13: #{tpu_custom_call.1} parent=1 // pred_fallthru
      _
    // Predicated region
    $region14: #{tpu_custom_call.1} parent=1 // pred_check
      _
    $region15: #{tpu_custom_call.1} parent=1 // pred_check_branch
      %35 = sbr.rel (0) target = $region17
    $region16: #{tpu_custom_call.1} parent=1 // pred_region
      %36 = dma.done [#allocation4], 128
    $region17: #{tpu_custom_call.1} parent=1 // pred_fallthru
      _
    %37 = vsyncpa [#allocation3], 1
    %38 = vsyncpa [#allocation4], 1

</llo_original>
